<compile_context>
chip_gen: v7x
topology: tpu7x:2x2x1
jax: 0.10.0
libtpu: 0.0.40
codegen_flags: <defaults>
</compile_context>

<pallas_src>
import functools

import jax
import jax.numpy as jnp
from jax import lax
from jax.experimental import pallas as pl
from jax.experimental.pallas import tpu as pltpu


def _round_up(x, m):
    return ((x + m - 1) // m) * m


def tictactoe_kernel(x_ref, w1_ref, b1_ref, w2_ref, b2_ref, wh_ref, bh_ref,
                     out_ref, *, value_col):
    # x: [TB, S] bf16; weights bf16; biases f32; all matmuls accumulate in f32.
    x = x_ref[...]
    h1 = jnp.dot(x, w1_ref[...], preferred_element_type=jnp.float32) + b1_ref[...]
    h1 = jnp.maximum(h1, 0.0).astype(jnp.bfloat16)                  # relu(fc1)
    h2 = jnp.dot(h1, w2_ref[...], preferred_element_type=jnp.float32) + b2_ref[...]
    h2 = jnp.maximum(h2, 0.0).astype(jnp.bfloat16)                  # relu(fc2)
    # Fused policy|value head: [TB, 128] lane-dense block.
    head = jnp.dot(h2, wh_ref[...], preferred_element_type=jnp.float32) + bh_ref[...]
    col = lax.broadcasted_iota(jnp.int32, head.shape, dimension=1)
    # tanh only on the value column; policy lanes stay as raw logits.
    out_ref[...] = jnp.where(col == value_col, jnp.tanh(head), head)


def tictactoe_forward(x, params, *, tb=1024):
    """x: [B, state_size] float32. Returns (policy_logits [B, A], value [B, 1])."""
    w1, b1, w2, b2, wp, bp, wv, bv = params
    B, S = x.shape
    H = w1.shape[1]
    A = wp.shape[1]
    OUT_W = 128 * pl.cdiv(A + 1, 128)   # lane-dense padded head width (>= 128)

    # Fuse policy + value heads into one padded [H, OUT_W] weight / [1, OUT_W] bias.
    w_head = (jnp.zeros((H, OUT_W), jnp.float32)
              .at[:, :A].set(wp)
              .at[:, A:A + 1].set(wv))
    b_head = (jnp.zeros((1, OUT_W), jnp.float32)
              .at[:, :A].set(bp)
              .at[:, A:A + 1].set(bv))

    # bf16 on the MXU; biases stay f32 (added post-accumulation).
    x_bf = x.astype(jnp.bfloat16)
    w1_bf = w1.astype(jnp.bfloat16)
    w2_bf = w2.astype(jnp.bfloat16)
    wh_bf = w_head.astype(jnp.bfloat16)

    # Batch tiling: TB multiple of 8, batch padded to a multiple of TB.
    TB = min(tb, _round_up(B, 8))
    B_pad = _round_up(B, TB)
    if B_pad != B:
        x_bf = jnp.pad(x_bf, ((0, B_pad - B), (0, 0)))

    kernel = functools.partial(tictactoe_kernel, value_col=A)

    out = pl.pallas_call(
        kernel,
        out_shape=jax.ShapeDtypeStruct((B_pad, OUT_W), jnp.float32),
        grid=(B_pad // TB,),
        in_specs=[
            pl.BlockSpec((TB, S), lambda i: (i, 0)),           # x: tiled over batch
            pl.BlockSpec(w1_bf.shape, lambda i: (0, 0)),       # weights resident
            pl.BlockSpec(b1.shape, lambda i: (0, 0)),
            pl.BlockSpec(w2_bf.shape, lambda i: (0, 0)),
            pl.BlockSpec(b2.shape, lambda i: (0, 0)),
            pl.BlockSpec(wh_bf.shape, lambda i: (0, 0)),
            pl.BlockSpec(b_head.shape, lambda i: (0, 0)),
        ],
        out_specs=pl.BlockSpec((TB, OUT_W), lambda i: (i, 0)),
        compiler_params=pltpu.CompilerParams(
            dimension_semantics=("parallel",)),                # 2x TC on v7x
    )(x_bf, w1_bf, b1, w2_bf, b2, wh_bf, b_head)

    policy = out[:B, :A]
    value = out[:B, A:A + 1]
    return policy, value


def init_params(key, state_size, output_size, hidden=64):
    """PyTorch-nn.Linear-style init: U(-1/sqrt(fan_in), 1/sqrt(fan_in)); W stored [in, out]."""
    def linear(k, fan_in, fan_out):
        kw, kb = jax.random.split(k)
        bound = 1.0 / jnp.sqrt(jnp.float32(fan_in))
        w = jax.random.uniform(kw, (fan_in, fan_out), jnp.float32, -bound, bound)
        b = jax.random.uniform(kb, (1, fan_out), jnp.float32, -bound, bound)
        return w, b

    k1, k2, k3, k4 = jax.random.split(key, 4)
    w1, b1 = linear(k1, state_size, hidden)      # fc1
    w2, b2 = linear(k2, hidden, hidden)          # fc2
    wp, bp = linear(k3, hidden, output_size)     # policy_head
    wv, bv = linear(k4, hidden, 1)               # value_head
    return w1, b1, w2, b2, wp, bp, wv, bv


def reference_forward_f32(x, params):
    """Pure f32 reference matching the PyTorch module semantics."""
    w1, b1, w2, b2, wp, bp, wv, bv = params
    h1 = jnp.maximum(x @ w1 + b1, 0.0)
    h2 = jnp.maximum(h1 @ w2 + b2, 0.0)
    return h2 @ wp + bp, jnp.tanh(h2 @ wv + bv)


def reference_forward_bf16(x, params):
    """Mixed-precision reference mimicking the kernel's bf16-MXU / f32-accumulate flow."""
    w1, b1, w2, b2, wp, bp, wv, bv = params
    xb = x.astype(jnp.bfloat16)
    h1 = jnp.dot(xb, w1.astype(jnp.bfloat16),
                 preferred_element_type=jnp.float32) + b1
    h1 = jnp.maximum(h1, 0.0).astype(jnp.bfloat16)
    h2 = jnp.dot(h1, w2.astype(jnp.bfloat16),
                 preferred_element_type=jnp.float32) + b2
    h2 = jnp.maximum(h2, 0.0).astype(jnp.bfloat16)
    pol = jnp.dot(h2, wp.astype(jnp.bfloat16),
                  preferred_element_type=jnp.float32) + bp
    val = jnp.tanh(jnp.dot(h2, wv.astype(jnp.bfloat16),
                           preferred_element_type=jnp.float32) + bv)
    return pol, val


if __name__ == "__main__":
    STATE_SIZE = 9   # flattened 3x3 board
    ACTIONS = 9

    key = jax.random.PRNGKey(0)
    kparams, kx1, kx2 = jax.random.split(key, 3)
    params = init_params(kparams, STATE_SIZE, ACTIONS)

    # --- small batch (B=2, single tile, padded to 8 rows) ---
    B1 = 2
    x1 = (jax.random.randint(kx1, (B1, STATE_SIZE), 0, 3) - 1).astype(jnp.float32)
    policy1, value1 = tictactoe_forward(x1, params)
    jax.block_until_ready((policy1, value1))

    assert policy1.shape == (B1, ACTIONS)
    assert value1.shape == (B1, 1)
    ref_p, ref_v = reference_forward_bf16(x1, params)
    assert jnp.allclose(policy1, ref_p, atol=2e-3, rtol=2e-3)
    assert jnp.allclose(value1, ref_v, atol=2e-3, rtol=2e-3)
    ref_p32, ref_v32 = reference_forward_f32(x1, params)
    assert jnp.allclose(policy1, ref_p32, atol=5e-2, rtol=5e-2)
    assert jnp.allclose(value1, ref_v32, atol=5e-2, rtol=5e-2)

    # --- larger ragged batch (B=300, TB=128 -> multi-step grid + tail padding) ---
    B2 = 300
    x2 = (jax.random.randint(kx2, (B2, STATE_SIZE), 0, 3) - 1).astype(jnp.float32)
    policy2, value2 = tictactoe_forward(x2, params, tb=128)
    jax.block_until_ready((policy2, value2))

    assert policy2.shape == (B2, ACTIONS)
    assert value2.shape == (B2, 1)
    ref_p2, ref_v2 = reference_forward_bf16(x2, params)
    assert jnp.allclose(policy2, ref_p2, atol=2e-3, rtol=2e-3)
    assert jnp.allclose(value2, ref_v2, atol=2e-3, rtol=2e-3)

    print("KERNEL_OK")
</pallas_src>

<mosaic_0001>
module attributes {stable_mosaic.version = 11 : i64} {
  func.func @tictactoe_kernel(%arg0: i32, %arg1: memref<8x9xbf16, #tpu.memory_space<vmem>>, %arg2: memref<9x64xbf16, #tpu.memory_space<vmem>>, %arg3: memref<1x64xf32, #tpu.memory_space<vmem>>, %arg4: memref<64x64xbf16, #tpu.memory_space<vmem>>, %arg5: memref<1x64xf32, #tpu.memory_space<vmem>>, %arg6: memref<64x128xbf16, #tpu.memory_space<vmem>>, %arg7: memref<1x128xf32, #tpu.memory_space<vmem>>, %arg8: memref<8x128xf32, #tpu.memory_space<vmem>>) attributes {dimension_semantics = [#tpu.dimension_semantics<parallel>], iteration_bounds = array<i64: 1>, scalar_prefetch = 0 : i64, scratch_operands = 0 : i64, tpu.core_type = #tpu.core_type<tc>, window_params = [{transform_indices = @transform_0, window_bounds = array<i64: 8, 9>}, {pipeline_mode = #tpu.pipeline_mode<synchronous>, transform_indices = @transform_1, window_bounds = array<i64: 9, 64>}, {pipeline_mode = #tpu.pipeline_mode<synchronous>, transform_indices = @transform_2, window_bounds = array<i64: 1, 64>}, {pipeline_mode = #tpu.pipeline_mode<synchronous>, transform_indices = @transform_3, window_bounds = array<i64: 64, 64>}, {pipeline_mode = #tpu.pipeline_mode<synchronous>, transform_indices = @transform_4, window_bounds = array<i64: 1, 64>}, {pipeline_mode = #tpu.pipeline_mode<synchronous>, transform_indices = @transform_5, window_bounds = array<i64: 64, 128>}, {pipeline_mode = #tpu.pipeline_mode<synchronous>, transform_indices = @transform_6, window_bounds = array<i64: 1, 128>}, {transform_indices = @transform_7, window_bounds = array<i64: 8, 128>}]} {
    %c0 = arith.constant 0 : index
    %c0_0 = arith.constant 0 : index
    %0 = vector.load %arg1[%c0, %c0_0] : memref<8x9xbf16, #tpu.memory_space<vmem>>, vector<8x9xbf16>
    %c0_1 = arith.constant 0 : index
    %c0_2 = arith.constant 0 : index
    %1 = vector.load %arg2[%c0_1, %c0_2] : memref<9x64xbf16, #tpu.memory_space<vmem>>, vector<9x64xbf16>
    %cst = arith.constant dense<0.000000e+00> : vector<8x64xf32>
    %2 = tpu.matmul %0, %1, %cst {dimension_numbers = #tpu.dot_dimension_numbers<[1], [0], [0], [1], [0, 0, 1, 1], [], []>} : vector<8x9xbf16>, vector<9x64xbf16>, vector<8x64xf32> -> vector<8x64xf32>
    %c0_3 = arith.constant 0 : index
    %c0_4 = arith.constant 0 : index
    %3 = vector.load %arg3[%c0_3, %c0_4] : memref<1x64xf32, #tpu.memory_space<vmem>>, vector<1x64xf32>
    %4 = vector.broadcast %3 : vector<1x64xf32> to vector<8x64xf32>
    %5 = arith.addf %2, %4 : vector<8x64xf32>
    %cst_5 = arith.constant 0.000000e+00 : f32
    %6 = vector.broadcast %cst_5 : f32 to vector<8x64xf32>
    %7 = arith.maximumf %5, %6 : vector<8x64xf32>
    %8 = arith.truncf %7 : vector<8x64xf32> to vector<8x64xbf16>
    %c0_6 = arith.constant 0 : index
    %c0_7 = arith.constant 0 : index
    %9 = vector.load %arg4[%c0_6, %c0_7] : memref<64x64xbf16, #tpu.memory_space<vmem>>, vector<64x64xbf16>
    %cst_8 = arith.constant dense<0.000000e+00> : vector<8x64xf32>
    %10 = tpu.matmul %8, %9, %cst_8 {dimension_numbers = #tpu.dot_dimension_numbers<[1], [0], [0], [1], [0, 0, 1, 1], [], []>} : vector<8x64xbf16>, vector<64x64xbf16>, vector<8x64xf32> -> vector<8x64xf32>
    %c0_9 = arith.constant 0 : index
    %c0_10 = arith.constant 0 : index
    %11 = vector.load %arg5[%c0_9, %c0_10] : memref<1x64xf32, #tpu.memory_space<vmem>>, vector<1x64xf32>
    %12 = vector.broadcast %11 : vector<1x64xf32> to vector<8x64xf32>
    %13 = arith.addf %10, %12 : vector<8x64xf32>
    %cst_11 = arith.constant 0.000000e+00 : f32
    %14 = vector.broadcast %cst_11 : f32 to vector<8x64xf32>
    %15 = arith.maximumf %13, %14 : vector<8x64xf32>
    %16 = arith.truncf %15 : vector<8x64xf32> to vector<8x64xbf16>
    %c0_12 = arith.constant 0 : index
    %c0_13 = arith.constant 0 : index
    %17 = vector.load %arg6[%c0_12, %c0_13] : memref<64x128xbf16, #tpu.memory_space<vmem>>, vector<64x128xbf16>
    %cst_14 = arith.constant dense<0.000000e+00> : vector<8x128xf32>
    %18 = tpu.matmul %16, %17, %cst_14 {dimension_numbers = #tpu.dot_dimension_numbers<[1], [0], [0], [1], [0, 0, 1, 1], [], []>} : vector<8x64xbf16>, vector<64x128xbf16>, vector<8x128xf32> -> vector<8x128xf32>
    %c0_15 = arith.constant 0 : index
    %c0_16 = arith.constant 0 : index
    %19 = vector.load %arg7[%c0_15, %c0_16] : memref<1x128xf32, #tpu.memory_space<vmem>>, vector<1x128xf32>
    %20 = vector.broadcast %19 : vector<1x128xf32> to vector<8x128xf32>
    %21 = arith.addf %18, %20 : vector<8x128xf32>
    %22 = tpu.iota {dimensions = array<i32: 1>} : vector<8x128xi32>
    %c9_i32 = arith.constant 9 : i32
    %23 = vector.broadcast %c9_i32 : i32 to vector<8x128xi32>
    %24 = arith.cmpi eq, %22, %23 : vector<8x128xi32>
    %25 = math.tanh %21 : vector<8x128xf32>
    %26 = arith.select %24, %25, %21 : vector<8x128xi1>, vector<8x128xf32>
    %c0_17 = arith.constant 0 : index
    %c0_18 = arith.constant 0 : index
    %27 = vector.load %arg8[%c0_17, %c0_18] : memref<8x128xf32, #tpu.memory_space<vmem>>, vector<8x128xf32>
    tpu.vector_store %arg8[%c0_17, %c0_18], %26 {strides = array<i32>} : memref<8x128xf32, #tpu.memory_space<vmem>>, vector<8x128xf32>,
    return
  }
  func.func @transform_0(%arg0: i32) -> (i32, i32) {
    %c0_i32 = arith.constant 0 : i32
    %c0_i32_0 = arith.constant 0 : i32
    return %arg0, %c0_i32 : i32, i32
  }
  func.func @transform_1(%arg0: i32) -> (i32, i32) {
    %c0_i32 = arith.constant 0 : i32
    %c0_i32_0 = arith.constant 0 : i32
    %c0_i32_1 = arith.constant 0 : i32
    return %c0_i32, %c0_i32_0 : i32, i32
  }
  func.func @transform_2(%arg0: i32) -> (i32, i32) {
    %c0_i32 = arith.constant 0 : i32
    %c0_i32_0 = arith.constant 0 : i32
    %c0_i32_1 = arith.constant 0 : i32
    return %c0_i32, %c0_i32_0 : i32, i32
  }
  func.func @transform_3(%arg0: i32) -> (i32, i32) {
    %c0_i32 = arith.constant 0 : i32
    %c0_i32_0 = arith.constant 0 : i32
    %c0_i32_1 = arith.constant 0 : i32
    return %c0_i32, %c0_i32_0 : i32, i32
  }
  func.func @transform_4(%arg0: i32) -> (i32, i32) {
    %c0_i32 = arith.constant 0 : i32
    %c0_i32_0 = arith.constant 0 : i32
    %c0_i32_1 = arith.constant 0 : i32
    return %c0_i32, %c0_i32_0 : i32, i32
  }
  func.func @transform_5(%arg0: i32) -> (i32, i32) {
    %c0_i32 = arith.constant 0 : i32
    %c0_i32_0 = arith.constant 0 : i32
    %c0_i32_1 = arith.constant 0 : i32
    return %c0_i32, %c0_i32_0 : i32, i32
  }
  func.func @transform_6(%arg0: i32) -> (i32, i32) {
    %c0_i32 = arith.constant 0 : i32
    %c0_i32_0 = arith.constant 0 : i32
    %c0_i32_1 = arith.constant 0 : i32
    return %c0_i32, %c0_i32_0 : i32, i32
  }
  func.func @transform_7(%arg0: i32) -> (i32, i32) {
    %c0_i32 = arith.constant 0 : i32
    %c0_i32_0 = arith.constant 0 : i32
    return %arg0, %c0_i32 : i32, i32
  }
}

</mosaic_0001>

<llo_original>
// kernel: tpu_custom_call.1
$region0: #{tpu_custom_call.1}
  #allocation0 [shape = 'u32[]', space=smem, size = 0x4, offset = 0x4, fixed_abs, tag = 'smem constant byte address 0x4 - core index']
  #allocation1 [shape = 'u32[144,128]{1,0:T(1,128)}', space=vmem, size = 0x12000, scoped, tag = 'internal scratch']
  %s0 = inlined_call_operand.hbm [shape: bf16[8,9], index: 0, kind: input, shape index: {}]
  %s1 = inlined_call_operand.hbm [shape: bf16[9,64], index: 1, kind: input, shape index: {}]
  %s2 = inlined_call_operand.vmem [shape: f32[1,64], index: 2, kind: input, shape index: {}]
  %s3 = inlined_call_operand.hbm [shape: bf16[64,64], index: 3, kind: input, shape index: {}]
  %s4 = inlined_call_operand.vmem [shape: f32[1,64], index: 4, kind: input, shape index: {}]
  %s5 = inlined_call_operand.hbm [shape: bf16[64,128], index: 5, kind: input, shape index: {}]
  %s6 = inlined_call_operand.vmem [shape: f32[1,128], index: 6, kind: input, shape index: {}]
  %s7 = inlined_call_operand.hbm [shape: f32[8,128], index: 7, kind: output, shape index: {}]
  %s8 = sld [smem:[#allocation0]]
  $region54: #{tpu_custom_call.1} parent=0
    _
  %s10 = ssub.s32 1, %s8
  %s11 = scalar_select 0, %s10, %s8
  $region1: #{tpu_custom_call.1} parent=0
    #allocation2 [shape = 'u8[2048]{0}', space=vmem, size = 0x800, scoped, tag = 'input window, operand 0, single buffered']
    #allocation3 [shape = 's32[1]{0}', space=sflag, size = 0x4, scoped, tag = 'scoped memory for tpu_custom_call.1']
    #allocation4 [shape = 's32[1]{0}', space=sflag, size = 0x4, scoped, tag = 'scoped memory for tpu_custom_call.1']
    #allocation5 [shape = 'u8[4096]{0}', space=vmem, size = 0x1000, scoped, tag = 'input window, operand 1, single buffered']
    #allocation6 [shape = 's32[1]{0}', space=sflag, size = 0x4, scoped, tag = 'scoped memory for tpu_custom_call.1']
    #allocation7 [shape = 'u8[16384]{0}', space=vmem, size = 0x4000, scoped, tag = 'input window, operand 3, single buffered']
    #allocation8 [shape = 'u8[16384]{0}', space=vmem, size = 0x4000, scoped, tag = 'input window, operand 5, single buffered']
    #allocation9 [shape = 's32[1]{0}', space=sflag, size = 0x4, scoped, tag = 'scoped memory for tpu_custom_call.1']
    #allocation10 [shape = 'u8[4096]{0}', space=vmem, size = 0x1000, scoped, tag = 'output window, operand 0, single buffered']
    %12 = vsyncpa [#allocation3], 0
    %13 = vsyncpa [#allocation6], 0
    %14 = vsyncpa [#allocation9], 0
    %15 = vsyncpa [#allocation4], 0
    // Predicated region
    $region2: #{tpu_custom_call.1} parent=1 // pred_check
      _
    $region3: #{tpu_custom_call.1} parent=1 // pred_check_branch
      %17 = sbr.rel (0) target = $region5
    $region4: #{tpu_custom_call.1} parent=1 // pred_region
      %s19 = ssub.s32 64, 64
      %20 = vsyncadd [#allocation3], %s19
      %s22 = sshll.u32 [#allocation2], 4
      %s23 = int_to_ptr.vmem [resolvable:$true] %s22
      %25 = dma.hbm_to_vmem [thread:$0]  %s0, 64, %s23, [#allocation3]
    $region5: #{tpu_custom_call.1} parent=1 // pred_fallthru
      _
    // Predicated region
    $region6: #{tpu_custom_call.1} parent=1 // pred_check
      _
    $region7: #{tpu_custom_call.1} parent=1 // pred_check_branch
      %27 = sbr.rel (0) target = $region9
    $region8: #{tpu_custom_call.1} parent=1 // pred_region
      %s29 = ssub.s32 128, 128
      %30 = vsyncadd [#allocation6], %s29
      %s31 = sshll.u32 [#allocation5], 4
      %s32 = int_to_ptr.vmem [resolvable:$true] %s31
      %37 = dma.hbm_to_vmem [thread:$0]  %s1, 128, %s32, [#allocation6], 64, 64, 4
    $region9: #{tpu_custom_call.1} parent=1 // pred_fallthru
      _
    // Predicated region
    $region10: #{tpu_custom_call.1} parent=1 // pred_check
      _
    $region11: #{tpu_custom_call.1} parent=1 // pred_check_branch
      %39 = sbr.rel (0) target = $region13
    $region12: #{tpu_custom_call.1} parent=1 // pred_region
      _
    $region13: #{tpu_custom_call.1} parent=1 // pred_fallthru
      _
    // Predicated region
    $region14: #{tpu_custom_call.1} parent=1 // pred_check
      _
    $region15: #{tpu_custom_call.1} parent=1 // pred_check_branch
      %41 = sbr.rel (0) target = $region17
    $region16: #{tpu_custom_call.1} parent=1 // pred_region
      %s43 = ssub.s32 512, 512
      %44 = vsyncadd [#allocation6], %s43
      %s45 = sshll.u32 [#allocation7], 4
      %s46 = int_to_ptr.vmem [resolvable:$true] %s45
      %51 = dma.hbm_to_vmem [thread:$0]  %s3, 512, %s46, [#allocation6], 64, 64, 4
    $region17: #{tpu_custom_call.1} parent=1 // pred_fallthru
      _
    // Predicated region
    $region18: #{tpu_custom_call.1} parent=1 // pred_check
      _
    $region19: #{tpu_custom_call.1} parent=1 // pred_check_branch
      %53 = sbr.rel (0) target = $region21
    $region20: #{tpu_custom_call.1} parent=1 // pred_region
      _
    $region21: #{tpu_custom_call.1} parent=1 // pred_fallthru
      _
    // Predicated region
    $region22: #{tpu_custom_call.1} parent=1 // pred_check
      _
    $region23: #{tpu_custom_call.1} parent=1 // pred_check_branch
      %55 = sbr.rel (0) target = $region25
    $region24: #{tpu_custom_call.1} parent=1 // pred_region
      %s57 = ssub.s32 512, 512
      %58 = vsyncadd [#allocation9], %s57
      %s59 = sshll.u32 [#allocation8], 4
      %s60 = int_to_ptr.vmem [resolvable:$true] %s59
      %65 = dma.hbm_to_vmem [thread:$0]  %s5, 512, %s60, [#allocation9], 64, 64, 4
    $region25: #{tpu_custom_call.1} parent=1 // pred_fallthru
      _
    // Predicated region
    $region26: #{tpu_custom_call.1} parent=1 // pred_check
      _
    $region27: #{tpu_custom_call.1} parent=1 // pred_check_branch
      %67 = sbr.rel (0) target = $region29
    $region28: #{tpu_custom_call.1} parent=1 // pred_region
      _
    $region29: #{tpu_custom_call.1} parent=1 // pred_fallthru
      _
    // Predicated region
    $region30: #{tpu_custom_call.1} parent=1 // pred_check
      _
    $region31: #{tpu_custom_call.1} parent=1 // pred_check_branch
      %69 = sbr.rel (0) target = $region33
    $region32: #{tpu_custom_call.1} parent=1 // pred_region
      %70 = dma.done [#allocation3], 64
    $region33: #{tpu_custom_call.1} parent=1 // pred_fallthru
      _
    // Predicated region
    $region34: #{tpu_custom_call.1} parent=1 // pred_check
      _
    $region35: #{tpu_custom_call.1} parent=1 // pred_check_branch
      %72 = sbr.rel (0) target = $region37
    $region36: #{tpu_custom_call.1} parent=1 // pred_region
      %73 = dma.done [#allocation6], 128
    $region37: #{tpu_custom_call.1} parent=1 // pred_fallthru
      _
    // Predicated region
    $region38: #{tpu_custom_call.1} parent=1 // pred_check
      _
    $region39: #{tpu_custom_call.1} parent=1 // pred_check_branch
      %75 = sbr.rel (0) target = $region41
    $region40: #{tpu_custom_call.1} parent=1 // pred_region
      %76 = dma.done [#allocation6], 512
    $region41: #{tpu_custom_call.1} parent=1 // pred_fallthru
      _
    // Predicated region
    $region42: #{tpu_custom_call.1} parent=1 // pred_check
      _
    $region43: #{tpu_custom_call.1} parent=1 // pred_check_branch
      %78 = sbr.rel (0) target = $region45
    $region44: #{tpu_custom_call.1} parent=1 // pred_region
      %79 = dma.done [#allocation9], 512
    $region45: #{tpu_custom_call.1} parent=1 // pred_fallthru
      _
    %v81 = vld [vmem:[#allocation2] sm:$0xf]
    %v82 = vld [vmem:[#allocation5] sm:$0xf]
    %v83 = vld [vmem:[#allocation5 + $0x4] sm:$0x1]
    %v84 = vld [vmem:[%s2] sm:$0x1]
    %v86 = vlaneseq
    %v87 = vshrl.u32 %v86, 7
    %v88 = vsub.s32 0, %v87
    %v89 = vrot.slane %v84, %v88
    %v93 = vunpack.c.l.b16 %v82
    %v94 = vunpack.c.l.b16 %v83
    %v95 = vpack.c.b16 %v94, %v93
    %vm96 = vcmask 72704
    %v98 = vsel %vm96, %v81, 0
    %vm100 = vcmask 1043456
    %vm101 = vcmask 1044480
    %v102 = vsel %vm100, 4294967295, 65535
    %v103 = vsel %vm101, %v102, 0
    %v105 = vand.u32 %v95, %v103
    %107 = vmatprep.subr.bf16.mxu0 0
    %108 = vmatpush1.bf16.msra.mxu0 %v105
    %109 = vmatprep.subr.bf16.mxu0 0
    %110 = vmatpush1.bf16.msra.mxu0 0
    %111 = vmatprep.subr.bf16.mxu0 0
    %112 = vmatpush1.bf16.msra.mxu0 0
    %113 = vmatprep.subr.bf16.mxu0 0
    %114 = vmatpush1.bf16.msra.mxu0 0
    %115 = vmatprep.subr.bf16.mxu0 0
    %116 = vmatpush1.bf16.msra.mxu0 0
    %117 = vmatprep.subr.bf16.mxu0 0
    %118 = vmatpush1.bf16.msra.mxu0 0
    %119 = vmatprep.subr.bf16.mxu0 0
    %120 = vmatpush1.bf16.msra.mxu0 0
    %121 = vmatprep.subr.bf16.mxu0 0
    %122 = vmatpush1.bf16.msra.mxu0 0
    %123 = vmatprep.subr.bf16.mxu0 0
    %124 = vmatpush1.bf16.msra.mxu0 0
    %125 = vmatprep.subr.bf16.mxu0 0
    %126 = vmatpush1.bf16.msra.mxu0 0
    %127 = vmatprep.subr.bf16.mxu0 0
    %128 = vmatpush1.bf16.msra.mxu0 0
    %129 = vmatprep.subr.bf16.mxu0 0
    %130 = vmatpush1.bf16.msra.mxu0 0
    %131 = vmatprep.subr.bf16.mxu0 0
    %132 = vmatpush1.bf16.msra.mxu0 0
    %133 = vmatprep.subr.bf16.mxu0 0
    %134 = vmatpush1.bf16.msra.mxu0 0
    %135 = vmatprep.subr.bf16.mxu0 0
    %136 = vmatpush1.bf16.msra.mxu0 0
    %137 = vmatprep.subr.bf16.mxu0 0
    %138 = vmatpush1.bf16.msra.mxu0 0
    %139 = vmatprep.mubr.bf16.mxu0 0
    %140 = vmatmul.mubr.bf16.gmra.mrb[0].mxu0 %v98
    %v141 = vpop.f32.mrb[0].mxu0
    %v142 = vadd.f32 %v89, %v141
    %v143 = vpop.f32.mrb[0].mxu0
    %v144 = vpop.f32.mrb[0].mxu0
    %v145 = vpop.f32.mrb[0].mxu0
    %146 = vdwg.mxu0
    %v147 = vmax.f32 %v142, 0.0
    %v148 = vpack.c.bf16 %v147, %v147
    %v149 = vld [vmem:[#allocation7] sm:$0xf]
    %v150 = vld [vmem:[#allocation7 + $0x4] sm:$0xf]
    %v151 = vld [vmem:[#allocation7 + $0x8] sm:$0xf]
    %v152 = vld [vmem:[#allocation7 + $0xc] sm:$0xf]
    %v153 = vld [vmem:[#allocation7 + $0x10] sm:$0xf]
    %v154 = vld [vmem:[#allocation7 + $0x14] sm:$0xf]
    %v155 = vld [vmem:[#allocation7 + $0x18] sm:$0xf]
    %v156 = vld [vmem:[#allocation7 + $0x1c] sm:$0xf]
    %v157 = vld [vmem:[%s4] sm:$0x1]
    %v159 = vlaneseq
    %v160 = vshrl.u32 %v159, 7
    %v161 = vsub.s32 0, %v160
    %v162 = vrot.slane %v157, %v161
    %v172 = vunpack.c.l.b16 %v149
    %v173 = vunpack.c.l.b16 %v150
    %v174 = vunpack.c.l.b16 %v151
    %v175 = vunpack.c.l.b16 %v152
    %v176 = vunpack.c.l.b16 %v153
    %v177 = vunpack.c.l.b16 %v154
    %v178 = vunpack.c.l.b16 %v155
    %v179 = vunpack.c.l.b16 %v156
    %v180 = vpack.c.b16 %v173, %v172
    %v181 = vpack.c.b16 %v175, %v174
    %v182 = vpack.c.b16 %v177, %v176
    %v183 = vpack.c.b16 %v179, %v178
    %vm188 = vcmask 523264
    %v190 = vsel %vm188, %v148, 0
    %192 = vmatprep.subr.bf16.mxu0 0
    %193 = vmatpush1.bf16.msra.mxu0 %v180
    %194 = vmatprep.subr.bf16.mxu0 0
    %195 = vmatpush1.bf16.msra.mxu0 %v181
    %196 = vmatprep.subr.bf16.mxu0 0
    %197 = vmatpush1.bf16.msra.mxu0 %v182
    %198 = vmatprep.subr.bf16.mxu0 0
    %199 = vmatpush1.bf16.msra.mxu0 %v183
    %200 = vmatprep.subr.bf16.mxu0 0
    %201 = vmatpush1.bf16.msra.mxu0 0
    %202 = vmatprep.subr.bf16.mxu0 0
    %203 = vmatpush1.bf16.msra.mxu0 0
    %204 = vmatprep.subr.bf16.mxu0 0
    %205 = vmatpush1.bf16.msra.mxu0 0
    %206 = vmatprep.subr.bf16.mxu0 0
    %207 = vmatpush1.bf16.msra.mxu0 0
    %208 = vmatprep.subr.bf16.mxu0 0
    %209 = vmatpush1.bf16.msra.mxu0 0
    %210 = vmatprep.subr.bf16.mxu0 0
    %211 = vmatpush1.bf16.msra.mxu0 0
    %212 = vmatprep.subr.bf16.mxu0 0
    %213 = vmatpush1.bf16.msra.mxu0 0
    %214 = vmatprep.subr.bf16.mxu0 0
    %215 = vmatpush1.bf16.msra.mxu0 0
    %216 = vmatprep.subr.bf16.mxu0 0
    %217 = vmatpush1.bf16.msra.mxu0 0
    %218 = vmatprep.subr.bf16.mxu0 0
    %219 = vmatpush1.bf16.msra.mxu0 0
    %220 = vmatprep.subr.bf16.mxu0 0
    %221 = vmatpush1.bf16.msra.mxu0 0
    %222 = vmatprep.subr.bf16.mxu0 0
    %223 = vmatpush1.bf16.msra.mxu0 0
    %224 = vmatprep.mubr.bf16.mxu0 0
    %225 = vmatmul.mubr.bf16.gmra.mrb[0].mxu0 %v190
    %v226 = vpop.f32.mrb[0].mxu0
    %v227 = vadd.f32 %v162, %v226
    %v228 = vpop.f32.mrb[0].mxu0
    %v229 = vpop.f32.mrb[0].mxu0
    %v230 = vpop.f32.mrb[0].mxu0
    %231 = vdwg.mxu0
    %v232 = vmax.f32 %v227, 0.0
    %v233 = vpack.c.bf16 %v232, %v232
    %v234 = vld [vmem:[#allocation8] sm:$0xf]
    %v235 = vld [vmem:[#allocation8 + $0x4] sm:$0xf]
    %v236 = vld [vmem:[#allocation8 + $0x8] sm:$0xf]
    %v237 = vld [vmem:[#allocation8 + $0xc] sm:$0xf]
    %v238 = vld [vmem:[#allocation8 + $0x10] sm:$0xf]
    %v239 = vld [vmem:[#allocation8 + $0x14] sm:$0xf]
    %v240 = vld [vmem:[#allocation8 + $0x18] sm:$0xf]
    %v241 = vld [vmem:[#allocation8 + $0x1c] sm:$0xf]
    %v242 = vld [vmem:[%s6] sm:$0x1]
    %v244 = vlaneseq
    %v245 = vshrl.u32 %v244, 7
    %v246 = vsub.s32 0, %v245
    %v247 = vrot.slane %v242, %v246
    %v257 = vunpack.c.l.b16 %v234
    %v258 = vunpack.c.l.b16 %v235
    %v259 = vunpack.c.l.b16 %v236
    %v260 = vunpack.c.l.b16 %v237
    %v261 = vunpack.c.l.b16 %v238
    %v262 = vunpack.c.l.b16 %v239
    %v263 = vunpack.c.l.b16 %v240
    %v264 = vunpack.c.l.b16 %v241
    %v265 = vpack.c.b16 %v258, %v257
    %v266 = vpack.c.b16 %v260, %v259
    %v267 = vpack.c.b16 %v262, %v261
    %v268 = vpack.c.b16 %v264, %v263
    %v274 = vsel %vm188, %v233, 0
    %276 = vmatprep.subr.bf16.mxu0 0
    %277 = vmatpush1.bf16.msra.mxu0 %v265
    %278 = vmatprep.subr.bf16.mxu0 0
    %279 = vmatpush1.bf16.msra.mxu0 %v266
    %280 = vmatprep.subr.bf16.mxu0 0
    %281 = vmatpush1.bf16.msra.mxu0 %v267
    %282 = vmatprep.subr.bf16.mxu0 0
    %283 = vmatpush1.bf16.msra.mxu0 %v268
    %284 = vmatprep.subr.bf16.mxu0 0
    %285 = vmatpush1.bf16.msra.mxu0 0
    %286 = vmatprep.subr.bf16.mxu0 0
    %287 = vmatpush1.bf16.msra.mxu0 0
    %288 = vmatprep.subr.bf16.mxu0 0
    %289 = vmatpush1.bf16.msra.mxu0 0
    %290 = vmatprep.subr.bf16.mxu0 0
    %291 = vmatpush1.bf16.msra.mxu0 0
    %292 = vmatprep.subr.bf16.mxu0 0
    %293 = vmatpush1.bf16.msra.mxu0 0
    %294 = vmatprep.subr.bf16.mxu0 0
    %295 = vmatpush1.bf16.msra.mxu0 0
    %296 = vmatprep.subr.bf16.mxu0 0
    %297 = vmatpush1.bf16.msra.mxu0 0
    %298 = vmatprep.subr.bf16.mxu0 0
    %299 = vmatpush1.bf16.msra.mxu0 0
    %300 = vmatprep.subr.bf16.mxu0 0
    %301 = vmatpush1.bf16.msra.mxu0 0
    %302 = vmatprep.subr.bf16.mxu0 0
    %303 = vmatpush1.bf16.msra.mxu0 0
    %304 = vmatprep.subr.bf16.mxu0 0
    %305 = vmatpush1.bf16.msra.mxu0 0
    %306 = vmatprep.subr.bf16.mxu0 0
    %307 = vmatpush1.bf16.msra.mxu0 0
    %308 = vmatprep.mubr.bf16.mxu0 0
    %309 = vmatmul.mubr.bf16.gmra.mrb[0].mxu0 %v274
    %v310 = vpop.f32.mrb[0].mxu0
    %v311 = vadd.f32 %v247, %v310
    %v312 = vpop.f32.mrb[0].mxu0
    %v313 = vpop.f32.mrb[0].mxu0
    %v314 = vpop.f32.mrb[0].mxu0
    %315 = vdwg.mxu0
    %v316 = vlaneseq
    %v317 = vand.u32 %v316, 127
    %vm318 = vcmp.eq.s32.totalorder %v317, 9
    %v319 = vtanh.pop %v311
    %v320 = vsel %vm318, %v319, %v311
    %321 = vst [vmem:[#allocation10] sm:$0xff] %v320
    // Predicated region
    $region46: #{tpu_custom_call.1} parent=1 // pred_check
      _
    $region47: #{tpu_custom_call.1} parent=1 // pred_check_branch
      %323 = sbr.rel (0) target = $region49
    $region48: #{tpu_custom_call.1} parent=1 // pred_region
      %s325 = ssub.s32 128, 128
      %326 = vsyncadd [#allocation4], %s325
      %s328 = sshll.u32 [#allocation10], 4
      %s329 = int_to_ptr.vmem [resolvable:$true] %s328
      %331 = dma.vmem_to_hbm [thread:$0]  %s329, 128, %s7, [#allocation4]
    $region49: #{tpu_custom_call.1} parent=1 // pred_fallthru
      _
    // Predicated region
    $region50: #{tpu_custom_call.1} parent=1 // pred_check
      _
    $region51: #{tpu_custom_call.1} parent=1 // pred_check_branch
      %333 = sbr.rel (0) target = $region53
    $region52: #{tpu_custom_call.1} parent=1 // pred_region
      %334 = dma.done [#allocation4], 128
    $region53: #{tpu_custom_call.1} parent=1 // pred_fallthru
      _
    %335 = vsyncpa [#allocation3], 1
    %336 = vsyncpa [#allocation6], 1
    %337 = vsyncpa [#allocation9], 1
    %338 = vsyncpa [#allocation4], 1

</llo_original>
